<compile_context>
chip_gen: v7x
topology: tpu7x:2x2x1
jax: 0.10.0
libtpu: 0.0.40
codegen_flags: <defaults>
</compile_context>

<pallas_src>
import functools
import math

import jax
import jax.numpy as jnp
from jax.experimental import pallas as pl
from jax.experimental.pallas import tpu as pltpu

IMAGENET_DEFAULT_MEAN = (0.485, 0.456, 0.406)
IMAGENET_DEFAULT_STD = (0.229, 0.224, 0.225)


# ----------------------------------------------------------------------------
# Interpolation-matrix precompute (trace-time; constant-folded under jit).
# ----------------------------------------------------------------------------
def _bicubic_weight(x, a=-0.75):
    ax = jnp.abs(x)
    w_near = ((a + 2.0) * ax - (a + 3.0)) * ax * ax + 1.0
    w_far = (((ax - 5.0) * ax + 8.0) * ax - 4.0) * a
    return jnp.where(ax <= 1.0, w_near, jnp.where(ax < 2.0, w_far, 0.0))


def bicubic_resize_matrix(n_in, n_out):
    """M[n_out, n_in] such that out = M @ in (half-pixel centers, edge clamp)."""
    scale = n_in / n_out
    dst = jnp.arange(n_out, dtype=jnp.float32)
    src = (dst + 0.5) * scale - 0.5
    base = jnp.floor(src)
    m = jnp.zeros((n_out, n_in), jnp.float32)
    for k in range(-1, 3):
        tap = base + k
        w = _bicubic_weight(src - tap)
        idx = jnp.clip(tap, 0, n_in - 1).astype(jnp.int32)
        m = m + w[:, None] * jax.nn.one_hot(idx, n_in, dtype=jnp.float32)
    return m / jnp.sum(m, axis=1, keepdims=True)   # rows sum to 1


def time_interp_matrix(t_in, t_out):
    """Endpoint-aligned linear frame-interpolation matrix W[t_out, t_in]."""
    if t_in == 1:
        return jnp.ones((t_out, 1), jnp.float32)
    pos = jnp.linspace(0.0, float(t_in - 1), t_out)
    lo = jnp.clip(jnp.floor(pos), 0, t_in - 1)
    hi = jnp.clip(lo + 1.0, 0, t_in - 1)
    frac = (pos - lo).astype(jnp.float32)
    lo_oh = jax.nn.one_hot(lo.astype(jnp.int32), t_in, dtype=jnp.float32)
    hi_oh = jax.nn.one_hot(hi.astype(jnp.int32), t_in, dtype=jnp.float32)
    return (1.0 - frac)[:, None] * lo_oh + frac[:, None] * hi_oh


def _build_constants(t_in, c, h_in, w_in, input_size, num_frames, clips_per_block):
    """Resize matrix (bf16) + block-diag time/normalize matrix with bias column (f32)."""
    s = input_size
    a_mat = bicubic_resize_matrix(h_in, s)                     # (S, H_in)
    b_mat = bicubic_resize_matrix(w_in, s)                     # (S, W_in)
    # Kronecker resize matrix: mk[(h,w), (i,j)] = A[i,h] * B[j,w]; columns sum to 1.
    mk = jnp.kron(a_mat, b_mat).T                              # (H*W, S*S)

    wt = time_interp_matrix(t_in, num_frames)                  # (T_out, T_in)
    mean = jnp.asarray(IMAGENET_DEFAULT_MEAN, jnp.float32)
    istd = 1.0 / jnp.asarray(IMAGENET_DEFAULT_STD, jnp.float32)
    eye_c = jnp.eye(c, dtype=jnp.float32)
    # Per-clip matrix: rows in (c, t_out) order, COLUMNS in (t_in, c) order so
    # the input is a plain contiguous reshape of (T, C, H, W) — no transpose.
    wts_tc = jnp.einsum("ot,ij->iotj", wt, eye_c) * istd[:, None, None, None]
    wts_tc = wts_tc.reshape(c * num_frames, t_in * c)
    # Block-diagonal over the clips packed into one grid step.
    wts_blk = jnp.kron(jnp.eye(clips_per_block, dtype=jnp.float32), wts_tc)
    # Bias rides the second matmul via an appended column that multiplies the
    # constant ones row of the intermediate (pure-MXU normalization).
    bias_clip = jnp.repeat(-mean * istd, num_frames)[:, None]  # (C*T_out, 1)
    bias_blk = jnp.tile(bias_clip, (clips_per_block, 1))
    wtsb = jnp.concatenate([wts_blk, bias_blk], axis=1)        # (rows_out, rows_in+1)
    return mk.astype(jnp.bfloat16), wtsb


# ----------------------------------------------------------------------------
# Fused Pallas kernel: resize + time-interp + normalize, lane-dense output.
# ----------------------------------------------------------------------------
def _merrgb_fused_kernel(x_ref, mk_ref, wtsb_ref, o_ref, r_ref):
    rows_in = x_ref.shape[0]
    ss = r_ref.shape[1]
    # Spatial bicubic resize of every (clip, t, c) frame as ONE bf16 matmul:
    #   (rows_in, H*W) @ (H*W, S*S) -> (rows_in, S*S), f32 accumulation.
    r_ref[pl.ds(0, rows_in), :] = jnp.dot(
        x_ref[...], mk_ref[...], preferred_element_type=jnp.float32)
    # Constant ones row (every column of mk sums to 1, so this equals what an
    # appended ones input row would produce) -> carries -mean/std through the
    # second matmul, eliminating the bias input and the broadcast VPU add.
    r_ref[pl.ds(rows_in, 1), :] = jnp.ones((1, ss), jnp.float32)
    # Block-diagonal time interpolation with per-channel 1/std folded into the
    # rows and the bias in the last column:
    #   (rows_out, rows_in+1) @ (rows_in+1, S*S) -> (rows_out, S*S).
    # Output is lane-dense (multiple of 128) -> unmasked full-width stores.
    o_ref[...] = jnp.dot(wtsb_ref[...], r_ref[...],
                         preferred_element_type=jnp.float32)


def _call_fused(x2d, mk, wtsb, *, num_blocks, rows_in_blk, rows_out_blk, hw, ss):
    scratch = [pltpu.VMEM((rows_in_blk + 1, ss), jnp.float32)]
    out_shape = jax.ShapeDtypeStruct((num_blocks * rows_out_blk, ss), jnp.float32)

    if num_blocks == 1:
        # Single block: no grid at all -> no 1-step pipeline machinery.
        vmem = pltpu.MemorySpace.VMEM
        return pl.pallas_call(
            _merrgb_fused_kernel,
            out_shape=out_shape,
            in_specs=[pl.BlockSpec(memory_space=vmem)] * 3,
            out_specs=pl.BlockSpec(memory_space=vmem),
            scratch_shapes=scratch,
        )(x2d, mk, wtsb)

    return pl.pallas_call(
        _merrgb_fused_kernel,
        out_shape=out_shape,
        grid=(num_blocks,),
        in_specs=[
            # Clip block streams per step (bf16).
            pl.BlockSpec((rows_in_blk, hw), lambda b: (b, 0)),
            # Constant matrices: same block every step -> DMA'd once, VMEM-resident.
            pl.BlockSpec((hw, ss), lambda b: (0, 0)),
            pl.BlockSpec((rows_out_blk, rows_in_blk + 1), lambda b: (0, 0)),
        ],
        out_specs=pl.BlockSpec((rows_out_blk, ss), lambda b: (b, 0)),
        scratch_shapes=scratch,
        # v7x: the two TensorCores split the clip blocks; no-op on v5e/v6e.
        compiler_params=pltpu.CompilerParams(dimension_semantics=("parallel",)),
    )(x2d, mk, wtsb)


# ----------------------------------------------------------------------------
# Public entry points.
# ----------------------------------------------------------------------------
def merrgb_transform_batched(x_btchw, *, input_size=16, num_frames=8,
                             clips_per_block=8):
    """x_btchw: (B, T, C, H, W) float32 in [0,1] -> (B, C, num_frames, S, S) float32."""
    b, t_in, c, h_in, w_in = x_btchw.shape
    s = input_size
    hw, ss = h_in * w_in, s * s
    clips_per_block = math.gcd(max(1, int(clips_per_block)), b)
    num_blocks = b // clips_per_block
    rows_in_blk = clips_per_block * t_in * c
    rows_out_blk = clips_per_block * c * num_frames

    mk, wtsb = _build_constants(t_in, c, h_in, w_in, s, num_frames, clips_per_block)

    # Contiguous reshape (free) + bf16 cast: rows are (clip, t, c)-ordered, so
    # no wrapper transpose is needed (wtsb's columns are permuted instead).
    x2d = x_btchw.reshape(b * t_in * c, hw).astype(jnp.bfloat16)

    out2d = _call_fused(x2d, mk, wtsb, num_blocks=num_blocks,
                        rows_in_blk=rows_in_blk, rows_out_blk=rows_out_blk,
                        hw=hw, ss=ss)

    # (B*C*T_out, S*S) -> (B, C, T_out, S, S): contiguous == ConvertBCHWtoCBHW per clip.
    return out2d.reshape(b, c, num_frames, s, s)


def merrgb_transform(x_tchw, *, input_size=16, num_frames=8):
    """Single clip (T, C, H, W) -> (C, num_frames, S, S). Uses the no-grid path."""
    return merrgb_transform_batched(x_tchw[None], input_size=input_size,
                                    num_frames=num_frames, clips_per_block=1)[0]


# ----------------------------------------------------------------------------
# Pure-JAX f32 reference using the same interpolation matrices (sanity check).
# ----------------------------------------------------------------------------
def _reference(x_tchw, *, input_size=16, num_frames=8):
    t, c, h_in, w_in = x_tchw.shape
    hi = jax.lax.Precision.HIGHEST
    a = bicubic_resize_matrix(h_in, input_size)
    b = bicubic_resize_matrix(w_in, input_size)
    resized = jnp.einsum("ih,tchw,jw->tcij", a, x_tchw, b, precision=hi)
    wt = time_interp_matrix(t, num_frames)
    y = jnp.einsum("st,tcij->csij", wt, resized, precision=hi)
    mean = jnp.asarray(IMAGENET_DEFAULT_MEAN, jnp.float32).reshape(c, 1, 1, 1)
    std = jnp.asarray(IMAGENET_DEFAULT_STD, jnp.float32).reshape(c, 1, 1, 1)
    return (y - mean) / std


if __name__ == "__main__":
    key = jax.random.PRNGKey(0)
    B, T_IN, C, H_IN, W_IN = 16, 6, 3, 12, 12
    SIZE, NUM_FRAMES = 16, 8
    # Simulates ImglistToTensor output for a batch of clips: float32 in [0, 1].
    x = jax.random.uniform(key, (B, T_IN, C, H_IN, W_IN), dtype=jnp.float32)

    # bf16 streamed inputs / resize weights -> tolerance relaxed vs. the f32
    # reference (≈2e-2 worst-case error; fine for image preprocessing).
    ATOL, RTOL = 5e-2, 1e-2

    # Batched path: grid=(2,) with 8 clips per step, resident constants,
    # "parallel" batch axis.
    fwd_b = jax.jit(functools.partial(merrgb_transform_batched, input_size=SIZE,
                                      num_frames=NUM_FRAMES, clips_per_block=8))
    out_b = jax.block_until_ready(fwd_b(x))
    assert out_b.shape == (B, C, NUM_FRAMES, SIZE, SIZE), out_b.shape
    ref_b = jax.block_until_ready(
        jax.vmap(lambda xi: _reference(xi, input_size=SIZE, num_frames=NUM_FRAMES))(x))
    assert jnp.allclose(out_b, ref_b, atol=ATOL, rtol=RTOL), "batched mismatch vs reference"

    # Single-clip path: no grid at all (no 1-step pipeline overhead).
    fwd_1 = jax.jit(functools.partial(merrgb_transform, input_size=SIZE,
                                      num_frames=NUM_FRAMES))
    out_1 = jax.block_until_ready(fwd_1(x[0]))
    assert out_1.shape == (C, NUM_FRAMES, SIZE, SIZE), out_1.shape
    assert jnp.allclose(out_1, ref_b[0], atol=ATOL, rtol=RTOL), "single-clip mismatch vs reference"

    print("KERNEL_OK")
</pallas_src>

<mosaic_0001>
module attributes {stable_mosaic.version = 11 : i64} {
  func.func @_merrgb_fused_kernel(%arg0: i32, %arg1: memref<144x144xbf16, #tpu.memory_space<vmem>>, %arg2: memref<144x256xbf16, #tpu.memory_space<vmem>>, %arg3: memref<192x145xf32, #tpu.memory_space<vmem>>, %arg4: memref<192x256xf32, #tpu.memory_space<vmem>>, %arg5: memref<145x256xf32, #tpu.memory_space<vmem>>) attributes {dimension_semantics = [#tpu.dimension_semantics<parallel>], iteration_bounds = array<i64: 2>, scalar_prefetch = 0 : i64, scratch_operands = 1 : i64, tpu.core_type = #tpu.core_type<tc>, window_params = [{transform_indices = @transform_0, window_bounds = array<i64: 144, 144>}, {pipeline_mode = #tpu.pipeline_mode<synchronous>, transform_indices = @transform_1, window_bounds = array<i64: 144, 256>}, {pipeline_mode = #tpu.pipeline_mode<synchronous>, transform_indices = @transform_2, window_bounds = array<i64: 192, 145>}, {transform_indices = @transform_3, window_bounds = array<i64: 192, 256>}]} {
    %c0 = arith.constant 0 : index
    %c0_0 = arith.constant 0 : index
    %0 = vector.load %arg1[%c0, %c0_0] : memref<144x144xbf16, #tpu.memory_space<vmem>>, vector<144x144xbf16>
    %c0_1 = arith.constant 0 : index
    %c0_2 = arith.constant 0 : index
    %1 = vector.load %arg2[%c0_1, %c0_2] : memref<144x256xbf16, #tpu.memory_space<vmem>>, vector<144x256xbf16>
    %cst = arith.constant dense<0.000000e+00> : vector<144x256xf32>
    %2 = tpu.matmul %0, %1, %cst {dimension_numbers = #tpu.dot_dimension_numbers<[1], [0], [0], [1], [0, 0, 1, 1], [], []>} : vector<144x144xbf16>, vector<144x256xbf16>, vector<144x256xf32> -> vector<144x256xf32>
    %c0_3 = arith.constant 0 : index
    %c0_4 = arith.constant 0 : index
    %3 = vector.load %arg5[%c0_3, %c0_4] : memref<145x256xf32, #tpu.memory_space<vmem>>, vector<144x256xf32>
    tpu.vector_store %arg5[%c0_3, %c0_4], %2 {strides = array<i32>} : memref<145x256xf32, #tpu.memory_space<vmem>>, vector<144x256xf32>,
    %cst_5 = arith.constant 1.000000e+00 : f32
    %4 = vector.broadcast %cst_5 : f32 to vector<1x256xf32>
    %c144 = arith.constant 144 : index
    %c0_6 = arith.constant 0 : index
    %5 = vector.load %arg5[%c144, %c0_6] : memref<145x256xf32, #tpu.memory_space<vmem>>, vector<1x256xf32>
    tpu.vector_store %arg5[%c144, %c0_6], %4 {strides = array<i32>} : memref<145x256xf32, #tpu.memory_space<vmem>>, vector<1x256xf32>,
    %c0_7 = arith.constant 0 : index
    %c0_8 = arith.constant 0 : index
    %6 = vector.load %arg3[%c0_7, %c0_8] : memref<192x145xf32, #tpu.memory_space<vmem>>, vector<192x145xf32>
    %c0_9 = arith.constant 0 : index
    %c0_10 = arith.constant 0 : index
    %7 = vector.load %arg5[%c0_9, %c0_10] : memref<145x256xf32, #tpu.memory_space<vmem>>, vector<145x256xf32>
    %cst_11 = arith.constant dense<0.000000e+00> : vector<192x256xf32>
    %8 = tpu.matmul %6, %7, %cst_11 {dimension_numbers = #tpu.dot_dimension_numbers<[1], [0], [0], [1], [0, 0, 1, 1], [], []>} : vector<192x145xf32>, vector<145x256xf32>, vector<192x256xf32> -> vector<192x256xf32>
    %c0_12 = arith.constant 0 : index
    %c0_13 = arith.constant 0 : index
    %9 = vector.load %arg4[%c0_12, %c0_13] : memref<192x256xf32, #tpu.memory_space<vmem>>, vector<192x256xf32>
    tpu.vector_store %arg4[%c0_12, %c0_13], %8 {strides = array<i32>} : memref<192x256xf32, #tpu.memory_space<vmem>>, vector<192x256xf32>,
    return
  }
  func.func @transform_0(%arg0: i32) -> (i32, i32) {
    %c0_i32 = arith.constant 0 : i32
    %c0_i32_0 = arith.constant 0 : i32
    return %arg0, %c0_i32 : i32, i32
  }
  func.func @transform_1(%arg0: i32) -> (i32, i32) {
    %c0_i32 = arith.constant 0 : i32
    %c0_i32_0 = arith.constant 0 : i32
    %c0_i32_1 = arith.constant 0 : i32
    return %c0_i32, %c0_i32_0 : i32, i32
  }
  func.func @transform_2(%arg0: i32) -> (i32, i32) {
    %c0_i32 = arith.constant 0 : i32
    %c0_i32_0 = arith.constant 0 : i32
    %c0_i32_1 = arith.constant 0 : i32
    return %c0_i32, %c0_i32_0 : i32, i32
  }
  func.func @transform_3(%arg0: i32) -> (i32, i32) {
    %c0_i32 = arith.constant 0 : i32
    %c0_i32_0 = arith.constant 0 : i32
    return %arg0, %c0_i32 : i32, i32
  }
}

</mosaic_0001>

<llo_original>
// kernel: mul.19
$region0: #{mul.19}
  %s0 = inlined_call_operand.vmem [shape: f32[3,8,6,3], index: 0, kind: input, shape index: {}]
  %s1 = inlined_call_operand.vmem [shape: f32[24,18], index: 1, kind: output, shape index: {}]
  $region1: #{mul.19} parent=0
    #allocation0 [shape = 'u8[73728]{0}', space=vmem, size = 0x12000, scoped, tag = 'scoped mem for input reshape']
    %s3 = sshllo.u32 0, 4
    %s4 = smul.addr 4, 17
    %s5 = scalar_lea.vmem %s0, %s4
    %v6 = vld [vmem:[%s5] sm:%s3]
    %s7 = scalar_lea.vmem [#allocation0], 136
    %8 = vst [vmem:[%s7] sm:%s3] %v6
    %s9 = smul.addr 4, 16
    %s10 = scalar_lea.vmem %s0, %s9
    %v11 = vld [vmem:[%s10] sm:%s3]
    %s12 = scalar_lea.vmem [#allocation0], 128
    %13 = vst [vmem:[%s12] sm:%s3] %v11
    %s14 = smul.addr 4, 15
    %s15 = scalar_lea.vmem %s0, %s14
    %v16 = vld [vmem:[%s15] sm:%s3]
    %s17 = scalar_lea.vmem [#allocation0], 120
    %18 = vst [vmem:[%s17] sm:%s3] %v16
    %s19 = smul.addr 4, 14
    %s20 = scalar_lea.vmem %s0, %s19
    %v21 = vld [vmem:[%s20] sm:%s3]
    %s22 = scalar_lea.vmem [#allocation0], 112
    %23 = vst [vmem:[%s22] sm:%s3] %v21
    %s24 = smul.addr 4, 13
    %s25 = scalar_lea.vmem %s0, %s24
    %v26 = vld [vmem:[%s25] sm:%s3]
    %s27 = scalar_lea.vmem [#allocation0], 104
    %28 = vst [vmem:[%s27] sm:%s3] %v26
    %s29 = smul.addr 4, 12
    %s30 = scalar_lea.vmem %s0, %s29
    %v31 = vld [vmem:[%s30] sm:%s3]
    %s32 = scalar_lea.vmem [#allocation0], 96
    %33 = vst [vmem:[%s32] sm:%s3] %v31
    %s34 = smul.addr 4, 11
    %s35 = scalar_lea.vmem %s0, %s34
    %v36 = vld [vmem:[%s35] sm:%s3]
    %s37 = scalar_lea.vmem [#allocation0], 88
    %38 = vst [vmem:[%s37] sm:%s3] %v36
    %s39 = smul.addr 4, 10
    %s40 = scalar_lea.vmem %s0, %s39
    %v41 = vld [vmem:[%s40] sm:%s3]
    %s42 = scalar_lea.vmem [#allocation0], 80
    %43 = vst [vmem:[%s42] sm:%s3] %v41
    %s44 = smul.addr 4, 9
    %s45 = scalar_lea.vmem %s0, %s44
    %v46 = vld [vmem:[%s45] sm:%s3]
    %s47 = scalar_lea.vmem [#allocation0], 72
    %48 = vst [vmem:[%s47] sm:%s3] %v46
    %s49 = smul.addr 4, 8
    %s50 = scalar_lea.vmem %s0, %s49
    %v51 = vld [vmem:[%s50] sm:%s3]
    %s52 = scalar_lea.vmem [#allocation0], 64
    %53 = vst [vmem:[%s52] sm:%s3] %v51
    %s54 = smul.addr 4, 7
    %s55 = scalar_lea.vmem %s0, %s54
    %v56 = vld [vmem:[%s55] sm:%s3]
    %s57 = scalar_lea.vmem [#allocation0], 56
    %58 = vst [vmem:[%s57] sm:%s3] %v56
    %s59 = smul.addr 4, 6
    %s60 = scalar_lea.vmem %s0, %s59
    %v61 = vld [vmem:[%s60] sm:%s3]
    %s62 = scalar_lea.vmem [#allocation0], 48
    %63 = vst [vmem:[%s62] sm:%s3] %v61
    %s64 = smul.addr 4, 5
    %s65 = scalar_lea.vmem %s0, %s64
    %v66 = vld [vmem:[%s65] sm:%s3]
    %s67 = scalar_lea.vmem [#allocation0], 40
    %68 = vst [vmem:[%s67] sm:%s3] %v66
    %s69 = smul.addr 4, 4
    %s70 = scalar_lea.vmem %s0, %s69
    %v71 = vld [vmem:[%s70] sm:%s3]
    %s72 = scalar_lea.vmem [#allocation0], 32
    %73 = vst [vmem:[%s72] sm:%s3] %v71
    %s74 = smul.addr 4, 3
    %s75 = scalar_lea.vmem %s0, %s74
    %v76 = vld [vmem:[%s75] sm:%s3]
    %s77 = scalar_lea.vmem [#allocation0], 24
    %78 = vst [vmem:[%s77] sm:%s3] %v76
    %s79 = smul.addr 4, 2
    %s80 = scalar_lea.vmem %s0, %s79
    %v81 = vld [vmem:[%s80] sm:%s3]
    %s82 = scalar_lea.vmem [#allocation0], 16
    %83 = vst [vmem:[%s82] sm:%s3] %v81
    %s84 = scalar_lea.vmem %s0, 4
    %v85 = vld [vmem:[%s84] sm:%s3]
    %s86 = scalar_lea.vmem [#allocation0], 8
    %87 = vst [vmem:[%s86] sm:%s3] %v85
    %v88 = vld [vmem:[%s0] sm:%s3]
    %89 = vst [vmem:[#allocation0] sm:%s3] %v88
    %v90 = vld [vmem:[#allocation0] ss:$8 sm:$0xf]
    %v91 = vld [vmem:[#allocation0] ss:$8 sm:$0xf0]
    %vm92 = vcmask 1047556
    %v93 = vsel %vm92, %v91, %v90
    %vm94 = vcmask 64512
    %95 = vst.msk [vmem:[%s1] sm:$0xff] %vm94, %v93
    %s96 = scalar_lea.vmem [#allocation0], 64
    %v97 = vld [vmem:[%s96] ss:$8 sm:$0xf]
    %s98 = scalar_lea.vmem [#allocation0], 64
    %v99 = vld [vmem:[%s98] ss:$8 sm:$0xf0]
    %vm100 = vcmask 1047556
    %v101 = vsel %vm100, %v99, %v97
    %vm102 = vcmask 64512
    %s103 = scalar_lea.vmem %s1, 8
    %104 = vst.msk [vmem:[%s103] sm:$0xff] %vm102, %v101
    %s105 = scalar_lea.vmem [#allocation0], 128
    %s106 = smov 3
    %v107 = vld [vmem:[%s105] ss:$8 sm:%s106]
    %vm108 = vcmask 64512
    %s109 = scalar_lea.vmem %s1, 16
    %110 = vst.msk [vmem:[%s109] sm:$0x3] %vm108, %v107
    %s111 = scalar_lea.vmem [#allocation0], 2
    %v112 = vld [vmem:[%s111] ss:$8 sm:$0xf]
    %s113 = scalar_lea.vmem [#allocation0], 2
    %v114 = vld [vmem:[%s113] ss:$8 sm:$0xf0]
    %vm115 = vcmask 1047556
    %v116 = vsel %vm115, %v114, %v112
    %117 = vrot.lane.b32.xlu0 %v116, 16
    %v118 = vpop.permute.xlu0 %117
    %vm119 = vcmask 195712
    %120 = vst.msk [vmem:[%s1] sm:$0xff] %vm119, %v118
    %s121 = scalar_lea.vmem [#allocation0], 66
    %v122 = vld [vmem:[%s121] ss:$8 sm:$0xf]
    %s123 = scalar_lea.vmem [#allocation0], 66
    %v124 = vld [vmem:[%s123] ss:$8 sm:$0xf0]
    %vm125 = vcmask 1047556
    %v126 = vsel %vm125, %v124, %v122
    %127 = vrot.lane.b32.xlu0 %v126, 16
    %v128 = vpop.permute.xlu0 %127
    %vm129 = vcmask 195712
    %s130 = scalar_lea.vmem %s1, 8
    %131 = vst.msk [vmem:[%s130] sm:$0xff] %vm129, %v128
    %s132 = scalar_lea.vmem [#allocation0], 130
    %s133 = smov 3
    %v134 = vld [vmem:[%s132] ss:$8 sm:%s133]
    %135 = vrot.lane.b32.xlu0 %v134, 16
    %v136 = vpop.permute.xlu0 %135
    %vm137 = vcmask 195712
    %s138 = scalar_lea.vmem %s1, 16
    %139 = vst.msk [vmem:[%s138] sm:$0x3] %vm137, %v136
    %s140 = scalar_lea.vmem [#allocation0], 1
    %v141 = vld [vmem:[%s140] ss:$8 sm:$0xf]
    %s142 = scalar_lea.vmem [#allocation0], 1
    %v143 = vld [vmem:[%s142] ss:$8 sm:$0xf0]
    %vm144 = vcmask 1047556
    %v145 = vsel %vm144, %v143, %v141
    %146 = vrot.lane.b32.xlu0 %v145, 8
    %v147 = vpop.permute.xlu0 %146
    %vm148 = vcmask 130112
    %149 = vst.msk [vmem:[%s1] sm:$0xff] %vm148, %v147
    %s150 = scalar_lea.vmem [#allocation0], 65
    %v151 = vld [vmem:[%s150] ss:$8 sm:$0xf]
    %s152 = scalar_lea.vmem [#allocation0], 65
    %v153 = vld [vmem:[%s152] ss:$8 sm:$0xf0]
    %vm154 = vcmask 1047556
    %v155 = vsel %vm154, %v153, %v151
    %156 = vrot.lane.b32.xlu0 %v155, 8
    %v157 = vpop.permute.xlu0 %156
    %vm158 = vcmask 130112
    %s159 = scalar_lea.vmem %s1, 8
    %160 = vst.msk [vmem:[%s159] sm:$0xff] %vm158, %v157
    %s161 = scalar_lea.vmem [#allocation0], 129
    %s162 = smov 3
    %v163 = vld [vmem:[%s161] ss:$8 sm:%s162]
    %164 = vrot.lane.b32.xlu0 %v163, 8
    %v165 = vpop.permute.xlu0 %164
    %vm166 = vcmask 130112
    %s167 = scalar_lea.vmem %s1, 16
    %168 = vst.msk [vmem:[%s167] sm:$0x3] %vm166, %v165

// kernel: merrgb_transform_batched.1
$region0: #{merrgb_transform_batched.1}
  #allocation0 [shape = 'u32[]', space=smem, size = 0x4, offset = 0x4, fixed_abs, tag = 'smem constant byte address 0x4 - core index']
  #allocation1 [shape = 'u32[144,128]{1,0:T(1,128)}', space=vmem, size = 0x12000, scoped, tag = 'internal scratch']
  #allocation2 [shape = 'f32[145,256]{1,0:T(8,128)}', space=vmem, size = 0x26000, scoped, tag = 'scratch operand']
  %s0 = inlined_call_operand.vmem [shape: bf16[288,144], index: 0, kind: input, shape index: {}]
  %s1 = inlined_call_operand.vmem [shape: bf16[144,256], index: 1, kind: input, shape index: {}]
  %s2 = inlined_call_operand.vmem [shape: f32[192,145], index: 2, kind: input, shape index: {}]
  %s3 = inlined_call_operand.vmem [shape: f32[384,256], index: 3, kind: output, shape index: {}]
  %s4 = sld [smem:[#allocation0]]
  $region45: #{merrgb_transform_batched.1} parent=0
    _
  %s6 = ssub.s32 1, %s4
  %s7 = scalar_select 0, %s6, %s4
  loop: start=0, step=1, limit=4
  $region2: #{merrgb_transform_batched.1} parent=0 // loop_pre_header
    _
  $region3: #{merrgb_transform_batched.1} parent=0 // loop_header
    %s9 = sphi 0, %s13
    %p10 = scmp.ge.s32.totalorder %s9, 4
    %s19 = sphi 0, %s21
    %s22 = sphi 0, %s19
    %s23 = sphi 0, %s22
    %s39 = sphi 0, %s23
    %s43 = sphi 0, %s43
    %s45 = sphi 0, %s43
    %s46 = sphi 0, %s45
    %s60 = sphi 0, %s46
    %s64 = sphi 0, %s64
    %s66 = sphi 0, %s64
    %s67 = sphi 0, %s66
    %s81 = sphi 0, %s67
    %s87 = sphi 0, %s89
    %s90 = sphi 0, %s87
    %s91 = sphi 0, %s90
    %s107 = sphi 0, %s91
  $region4: #{merrgb_transform_batched.1} parent=0 // loop_header_branch
    %12 = sbr.rel (%p10) target = $region8
  $region5: #{merrgb_transform_batched.1} parent=0 // loop_body
    %s14 = ssub.s32 %s9, 1
    %s15 = ssub.s32 %s9, 2
    %s16 = sadd.s32 %s9, 1
    %s17 = ssub.s32 %s9, %s16
    %p18 = scmp.eq.s32.totalorder %s17, 0
    %s20 = sadd.s32 %s19, 1
    %s21 = scalar_select %p18, %s19, %s20
    %p24 = pneg %p18
    %p25 = scmp.eq.s32.totalorder %s9, 1
    %p26 = por %p24, %p25
    %p27 = scmp.ne.s32.totalorder %s19, %s22
    %p28 = scmp.eq.s32.totalorder %s9, 0
    %p29 = por %p27, %p28
    %p30 = scmp.ne.s32.totalorder %s19, %s22
    %p31 = scmp.eq.s32.totalorder %s14, 1
    %p32 = por %p30, %p31
    %p33 = scmp.ne.s32.totalorder %s22, %s23
    %p34 = scmp.eq.s32.totalorder %s14, 0
    %p35 = por %p33, %p34
    %p36 = scmp.ne.s32.totalorder %s22, %s23
    %p37 = scmp.eq.s32.totalorder %s15, 1
    %p38 = por %p36, %p37
    %p40 = scmp.ne.s32.totalorder %s23, %s39
    %p41 = scmp.eq.s32.totalorder %s15, 0
    %p42 = por %p40, %p41
    %s44 = sadd.s32 %s43, 1
    %p47 = scmp.eq.s32.totalorder %s9, 1
    %p48 = scmp.ne.s32.totalorder %s43, %s45
    %p49 = scmp.eq.s32.totalorder %s9, 0
    %p50 = por %p48, %p49
    %p51 = scmp.ne.s32.totalorder %s43, %s45
    %p52 = scmp.eq.s32.totalorder %s14, 1
    %p53 = por %p51, %p52
    %p54 = scmp.ne.s32.totalorder %s45, %s46
    %p55 = scmp.eq.s32.totalorder %s14, 0
    %p56 = por %p54, %p55
    %p57 = scmp.ne.s32.totalorder %s45, %s46
    %p58 = scmp.eq.s32.totalorder %s15, 1
    %p59 = por %p57, %p58
    %p61 = scmp.ne.s32.totalorder %s46, %s60
    %p62 = scmp.eq.s32.totalorder %s15, 0
    %p63 = por %p61, %p62
    %s65 = sadd.s32 %s64, 1
    %p68 = scmp.eq.s32.totalorder %s9, 1
    %p69 = scmp.ne.s32.totalorder %s64, %s66
    %p70 = scmp.eq.s32.totalorder %s9, 0
    %p71 = por %p69, %p70
    %p72 = scmp.ne.s32.totalorder %s64, %s66
    %p73 = scmp.eq.s32.totalorder %s14, 1
    %p74 = por %p72, %p73
    %p75 = scmp.ne.s32.totalorder %s66, %s67
    %p76 = scmp.eq.s32.totalorder %s14, 0
    %p77 = por %p75, %p76
    %p78 = scmp.ne.s32.totalorder %s66, %s67
    %p79 = scmp.eq.s32.totalorder %s15, 1
    %p80 = por %p78, %p79
    %p82 = scmp.ne.s32.totalorder %s67, %s81
    %p83 = scmp.eq.s32.totalorder %s15, 0
    %p84 = por %p82, %p83
    %s85 = ssub.s32 %s9, %s16
    %p86 = scmp.eq.s32.totalorder %s85, 0
    %s88 = sadd.s32 %s87, 1
    %s89 = scalar_select %p86, %s87, %s88
    %p92 = pneg %p86
    %p93 = scmp.eq.s32.totalorder %s9, 1
    %p94 = por %p92, %p93
    %p95 = scmp.ne.s32.totalorder %s87, %s90
    %p96 = scmp.eq.s32.totalorder %s9, 0
    %p97 = por %p95, %p96
    %p98 = scmp.ne.s32.totalorder %s87, %s90
    %p99 = scmp.eq.s32.totalorder %s14, 1
    %p100 = por %p98, %p99
    %p101 = scmp.ne.s32.totalorder %s90, %s91
    %p102 = scmp.eq.s32.totalorder %s14, 0
    %p103 = por %p101, %p102
    %p104 = scmp.ne.s32.totalorder %s90, %s91
    %p105 = scmp.eq.s32.totalorder %s15, 1
    %p106 = por %p104, %p105
    %p108 = scmp.ne.s32.totalorder %s91, %s107
    %p109 = scmp.eq.s32.totalorder %s15, 0
    %p110 = por %p108, %p109
    %p111 = scmp.le.s32.totalorder 1, %s9
    %p112 = scmp.lt.s32.totalorder %s9, 3
    %p113 = pnand %p111, %p112
    %p114 = pneg %p113
    // Predicated region
    $region9: #{merrgb_transform_batched.1} parent=5 // pred_check
      _
    $region10: #{merrgb_transform_batched.1} parent=5 // pred_check_branch
      %116 = sbr.rel (%p113) target = $region12
    $region11: #{merrgb_transform_batched.1} parent=5 // pred_region
      %s117 = ssub.s32 %s9, 1
      // Predicated region
      $region13: #{merrgb_transform_batched.1} parent=11 // pred_check
        %p118 = pneg %p56
      $region14: #{merrgb_transform_batched.1} parent=11 // pred_check_branch
        %120 = sbr.rel (%p118) target = $region16
      $region15: #{merrgb_transform_batched.1} parent=11 // pred_region
        _
      $region16: #{merrgb_transform_batched.1} parent=11 // pred_fallthru
        _
      // Predicated region
      $region17: #{merrgb_transform_batched.1} parent=11 // pred_check
        %p121 = pneg %p77
      $region18: #{merrgb_transform_batched.1} parent=11 // pred_check_branch
        %123 = sbr.rel (%p121) target = $region20
      $region19: #{merrgb_transform_batched.1} parent=11 // pred_region
        _
      $region20: #{merrgb_transform_batched.1} parent=11 // pred_fallthru
        _
    $region12: #{merrgb_transform_batched.1} parent=5 // pred_fallthru
      _
    %p124 = scmp.lt.s32.totalorder %s9, 2
    // Predicated region
    $region21: #{merrgb_transform_batched.1} parent=5 // pred_check
      %p125 = pneg %p124
    $region22: #{merrgb_transform_batched.1} parent=5 // pred_check_branch
      %127 = sbr.rel (%p125) target = $region24
    $region23: #{merrgb_transform_batched.1} parent=5 // pred_region
      // Predicated region
      $region25: #{merrgb_transform_batched.1} parent=23 // pred_check
        %p128 = pneg %p29
      $region26: #{merrgb_transform_batched.1} parent=23 // pred_check_branch
        %130 = sbr.rel (%p128) target = $region28
      $region27: #{merrgb_transform_batched.1} parent=23 // pred_region
        %s131 = smul.u32 18, %s9
        %p132 = scmp.lt.s32.totalorder %s131, 35
        %s133 = scalar_select %p132, %s131, 35
        %s134 = smul.addr %s133, 2
        %s135 = smul.addr %s134, 4
        %s136 = scalar_lea.vmem %s0, %s135
        %s137 = smul.u32 18, %s9
      $region28: #{merrgb_transform_batched.1} parent=23 // pred_fallthru
        _
    $region24: #{merrgb_transform_batched.1} parent=5 // pred_fallthru
      _
    %p138 = scmp.le.s32.totalorder 1, %s9
    %p139 = scmp.lt.s32.totalorder %s9, 3
    %p140 = pnand %p138, %p139
    %p141 = pneg %p140
    // Predicated region
    $region29: #{merrgb_transform_batched.1} parent=5 // pred_check
      _
    $region30: #{merrgb_transform_batched.1} parent=5 // pred_check_branch
      %143 = sbr.rel (%p140) target = $region32
    $region31: #{merrgb_transform_batched.1} parent=5 // pred_region
      %s144 = ssub.s32 %s9, 1
      %s145 = smul.u32 18, %s14
      %p146 = scmp.lt.s32.totalorder %s145, 35
      %s147 = scalar_select %p146, %s145, 35
      %s148 = smul.addr %s147, 2
      %s149 = smul.addr %s148, 4
      %s150 = scalar_lea.vmem %s0, %s149
      %p151 = pneg %p35
      %p152 = pneg %p32
      %p153 = pneg %p56
      %p154 = pneg %p53
      %p155 = pneg %p77
      %p156 = pneg %p74
      %p157 = pneg %p103
      %p158 = pneg %p100
      %s159 = smul.u32 24, %s14
      %p160 = scmp.lt.s32.totalorder %s159, 47
      %s161 = scalar_select %p160, %s159, 47
      %s162 = smul.addr %s161, 2
      %s163 = smul.addr %s162, 8
      %s164 = scalar_lea.vmem %s3, %s163
      %s165 = smul.u32 18, %s14
      %p166 = scmp.lt.s32.totalorder %s165, 35
      %s167 = scalar_select %p166, %s165, 35
      %s168 = smul.addr %s167, 2
      %s169 = smul.addr %s168, 4
      %s170 = scalar_lea.vmem %s0, %s169
      %s171 = smul.u32 18, %s14
      %s172 = smul.u32 24, %s14
      %p173 = scmp.lt.s32.totalorder %s172, 47
      %s174 = scalar_select %p173, %s172, 47
      %s175 = smul.addr %s174, 2
      %s176 = smul.addr %s175, 8
      %s177 = scalar_lea.vmem %s3, %s176
      %s178 = smul.u32 24, %s14
      %v180 = vld [vmem:[%s170] sm:$0xff]
      %v181 = vld [vmem:[%s170 + $0x8] sm:$0xff]
      %v182 = vld [vmem:[%s170 + $0x10] sm:$0xff]
      %v183 = vld [vmem:[%s170 + $0x18] sm:$0xff]
      %v184 = vld [vmem:[%s170 + $0x20] sm:$0xff]
      %v185 = vld [vmem:[%s170 + $0x28] sm:$0xff]
      %v186 = vld [vmem:[%s170 + $0x30] sm:$0xff]
      %v187 = vld [vmem:[%s170 + $0x38] sm:$0xff]
      %v188 = vld [vmem:[%s170 + $0x40] sm:$0xff]
      %v189 = vld [vmem:[%s170 + $0x48] sm:$0xff]
      %v190 = vld [vmem:[%s170 + $0x50] sm:$0xff]
      %v191 = vld [vmem:[%s170 + $0x58] sm:$0xff]
      %v192 = vld [vmem:[%s170 + $0x60] sm:$0xff]
      %v193 = vld [vmem:[%s170 + $0x68] sm:$0xff]
      %v194 = vld [vmem:[%s170 + $0x70] sm:$0xff]
      %v195 = vld [vmem:[%s170 + $0x78] sm:$0xff]
      %v196 = vld [vmem:[%s170 + $0x80] sm:$0xff]
      %v197 = vld [vmem:[%s170 + $0x88] sm:$0xff]
      %v198 = vld [vmem:[%s1] sm:$0xff]
      %v199 = vld [vmem:[%s1 + $0x8] sm:$0xff]
      %v200 = vld [vmem:[%s1 + $0x10] sm:$0xff]
      %v201 = vld [vmem:[%s1 + $0x18] sm:$0xff]
      %v202 = vld [vmem:[%s1 + $0x20] sm:$0xff]
      %v203 = vld [vmem:[%s1 + $0x28] sm:$0xff]
      %v204 = vld [vmem:[%s1 + $0x30] sm:$0xff]
      %v205 = vld [vmem:[%s1 + $0x38] sm:$0xff]
      %v206 = vld [vmem:[%s1 + $0x40] sm:$0xff]
      %v207 = vld [vmem:[%s1 + $0x48] sm:$0xff]
      %v208 = vld [vmem:[%s1 + $0x50] sm:$0xff]
      %v209 = vld [vmem:[%s1 + $0x58] sm:$0xff]
      %v210 = vld [vmem:[%s1 + $0x60] sm:$0xff]
      %v211 = vld [vmem:[%s1 + $0x68] sm:$0xff]
      %v212 = vld [vmem:[%s1 + $0x70] sm:$0xff]
      %v213 = vld [vmem:[%s1 + $0x78] sm:$0xff]
      %v214 = vld [vmem:[%s1 + $0x80] sm:$0xff]
      %v215 = vld [vmem:[%s1 + $0x88] sm:$0xff]
      %v234 = vunpack.c.l.b16 %v180
      %v235 = vunpack.c.h.b16 %v180
      %v236 = vunpack.c.l.b16 %v181
      %v237 = vunpack.c.h.b16 %v181
      %v238 = vunpack.c.l.b16 %v182
      %v239 = vunpack.c.h.b16 %v182
      %v240 = vunpack.c.l.b16 %v183
      %v241 = vunpack.c.h.b16 %v183
      %v242 = vunpack.c.l.b16 %v184
      %v243 = vunpack.c.h.b16 %v184
      %v244 = vunpack.c.l.b16 %v185
      %v245 = vunpack.c.h.b16 %v185
      %v246 = vunpack.c.l.b16 %v186
      %v247 = vunpack.c.h.b16 %v186
      %v248 = vunpack.c.l.b16 %v187
      %v249 = vunpack.c.h.b16 %v187
      %v250 = vunpack.c.l.b16 %v188
      %v251 = vunpack.c.h.b16 %v188
      %v252 = vunpack.c.l.b16 %v189
      %v253 = vunpack.c.h.b16 %v189
      %v254 = vunpack.c.l.b16 %v190
      %v255 = vunpack.c.h.b16 %v190
      %v256 = vunpack.c.l.b16 %v191
      %v257 = vunpack.c.h.b16 %v191
      %v258 = vunpack.c.l.b16 %v192
      %v259 = vunpack.c.h.b16 %v192
      %v260 = vunpack.c.l.b16 %v193
      %v261 = vunpack.c.h.b16 %v193
      %v262 = vunpack.c.l.b16 %v194
      %v263 = vunpack.c.h.b16 %v194
      %v264 = vunpack.c.l.b16 %v195
      %v265 = vunpack.c.h.b16 %v195
      %v266 = vunpack.c.l.b16 %v196
      %v267 = vunpack.c.h.b16 %v196
      %v268 = vunpack.c.l.b16 %v197
      %v269 = vunpack.c.h.b16 %v197
      %v270 = vpack.c.b16 %v236, %v234
      %v271 = vpack.c.b16 %v237, %v235
      %v272 = vpack.c.b16 %v240, %v238
      %v273 = vpack.c.b16 %v241, %v239
      %v274 = vpack.c.b16 %v244, %v242
      %v275 = vpack.c.b16 %v245, %v243
      %v276 = vpack.c.b16 %v248, %v246
      %v277 = vpack.c.b16 %v249, %v247
      %v278 = vpack.c.b16 %v252, %v250
      %v279 = vpack.c.b16 %v253, %v251
      %v280 = vpack.c.b16 %v256, %v254
      %v281 = vpack.c.b16 %v257, %v255
      %v282 = vpack.c.b16 %v260, %v258
      %v283 = vpack.c.b16 %v261, %v259
      %v284 = vpack.c.b16 %v264, %v262
      %v285 = vpack.c.b16 %v265, %v263
      %v286 = vpack.c.b16 %v268, %v266
      %v287 = vpack.c.b16 %v269, %v267
      %v315 = vunpack.c.l.b16 %v198
      %v316 = vunpack.c.h.b16 %v198
      %v317 = vunpack.c.l.b16 %v199
      %v318 = vunpack.c.h.b16 %v199
      %v319 = vunpack.c.l.b16 %v200
      %v320 = vunpack.c.h.b16 %v200
      %v321 = vunpack.c.l.b16 %v201
      %v322 = vunpack.c.h.b16 %v201
      %v323 = vunpack.c.l.b16 %v202
      %v324 = vunpack.c.h.b16 %v202
      %v325 = vunpack.c.l.b16 %v203
      %v326 = vunpack.c.h.b16 %v203
      %v327 = vunpack.c.l.b16 %v204
      %v328 = vunpack.c.h.b16 %v204
      %v329 = vunpack.c.l.b16 %v205
      %v330 = vunpack.c.h.b16 %v205
      %v331 = vunpack.c.l.b16 %v206
      %v332 = vunpack.c.h.b16 %v206
      %v333 = vunpack.c.l.b16 %v207
      %v334 = vunpack.c.h.b16 %v207
      %v335 = vunpack.c.l.b16 %v208
      %v336 = vunpack.c.h.b16 %v208
      %v337 = vunpack.c.l.b16 %v209
      %v338 = vunpack.c.h.b16 %v209
      %v339 = vunpack.c.l.b16 %v210
      %v340 = vunpack.c.h.b16 %v210
      %v341 = vunpack.c.l.b16 %v211
      %v342 = vunpack.c.h.b16 %v211
      %v343 = vunpack.c.l.b16 %v212
      %v344 = vunpack.c.h.b16 %v212
      %v345 = vunpack.c.l.b16 %v213
      %v346 = vunpack.c.h.b16 %v213
      %v347 = vunpack.c.l.b16 %v214
      %v348 = vunpack.c.h.b16 %v214
      %v349 = vunpack.c.l.b16 %v215
      %v350 = vunpack.c.h.b16 %v215
      %v351 = vpack.c.b16 %v317, %v315
      %v352 = vpack.c.b16 %v318, %v316
      %v353 = vpack.c.b16 %v321, %v319
      %v354 = vpack.c.b16 %v322, %v320
      %v355 = vpack.c.b16 %v325, %v323
      %v356 = vpack.c.b16 %v326, %v324
      %v357 = vpack.c.b16 %v329, %v327
      %v358 = vpack.c.b16 %v330, %v328
      %v359 = vpack.c.b16 %v333, %v331
      %v360 = vpack.c.b16 %v334, %v332
      %v361 = vpack.c.b16 %v337, %v335
      %v362 = vpack.c.b16 %v338, %v336
      %v363 = vpack.c.b16 %v341, %v339
      %v364 = vpack.c.b16 %v342, %v340
      %v365 = vpack.c.b16 %v345, %v343
      %v366 = vpack.c.b16 %v346, %v344
      %v367 = vpack.c.b16 %v349, %v347
      %v368 = vpack.c.b16 %v350, %v348
      %vm387 = vcmask 130048
      %v389 = vsel %vm387, %v271, 0
      %v392 = vsel %vm387, %v273, 0
      %v395 = vsel %vm387, %v275, 0
      %v398 = vsel %vm387, %v277, 0
      %v401 = vsel %vm387, %v279, 0
      %v404 = vsel %vm387, %v281, 0
      %v407 = vsel %vm387, %v283, 0
      %v410 = vsel %vm387, %v285, 0
      %v413 = vsel %vm387, %v287, 0
      %415 = vmatprep.subr.bf16.mxu0 %v352
      %416 = vmatpush1.bf16.msra.mxu0 %v351
      %417 = vmatprep.subr.bf16.mxu0 %v354
      %418 = vmatpush1.bf16.msra.mxu0 %v353
      %419 = vmatprep.subr.bf16.mxu0 %v356
      %420 = vmatpush1.bf16.msra.mxu0 %v355
      %421 = vmatprep.subr.bf16.mxu0 %v358
      %422 = vmatpush1.bf16.msra.mxu0 %v357
      %423 = vmatprep.subr.bf16.mxu0 %v360
      %424 = vmatpush1.bf16.msra.mxu0 %v359
      %425 = vmatprep.subr.bf16.mxu0 %v362
      %426 = vmatpush1.bf16.msra.mxu0 %v361
      %427 = vmatprep.subr.bf16.mxu0 %v364
      %428 = vmatpush1.bf16.msra.mxu0 %v363
      %429 = vmatprep.subr.bf16.mxu0 %v366
      %430 = vmatpush1.bf16.msra.mxu0 %v365
      %431 = vmatprep.subr.bf16.mxu0 %v368
      %432 = vmatpush1.bf16.msra.mxu0 %v367
      %433 = vmatprep.subr.bf16.mxu0 0
      %434 = vmatpush1.bf16.msra.mxu0 0
      %435 = vmatprep.subr.bf16.mxu0 0
      %436 = vmatpush1.bf16.msra.mxu0 0
      %437 = vmatprep.subr.bf16.mxu0 0
      %438 = vmatpush1.bf16.msra.mxu0 0
      %439 = vmatprep.subr.bf16.mxu0 0
      %440 = vmatpush1.bf16.msra.mxu0 0
      %441 = vmatprep.subr.bf16.mxu0 0
      %442 = vmatpush1.bf16.msra.mxu0 0
      %443 = vmatprep.subr.bf16.mxu0 0
      %444 = vmatpush1.bf16.msra.mxu0 0
      %445 = vmatprep.subr.bf16.mxu0 0
      %446 = vmatpush1.bf16.msra.mxu0 0
      %447 = vmatprep.mubr.bf16.mxu0 %v389
      %448 = vmatmul.mubr.bf16.gmra.mrb[0].mxu0 %v270
      %v449 = vpop.f32.mrb[0].mxu0
      %v450 = vadd.f32 0.0, %v449
      %v451 = vpop.f32.mrb[0].mxu0
      %v452 = vadd.f32 0.0, %v451
      %v453 = vpop.f32.mrb[0].mxu0
      %v454 = vadd.f32 0.0, %v453
      %v455 = vpop.f32.mrb[0].mxu0
      %v456 = vadd.f32 0.0, %v455
      %457 = vmatprep.mubr.bf16.mxu0 %v392
      %458 = vmatmul.mubr.bf16.gmra.mrb[0].mxu0 %v272
      %v459 = vpop.f32.mrb[0].mxu0
      %v460 = vadd.f32 0.0, %v459
      %v461 = vpop.f32.mrb[0].mxu0
      %v462 = vadd.f32 0.0, %v461
      %v463 = vpop.f32.mrb[0].mxu0
      %v464 = vadd.f32 0.0, %v463
      %v465 = vpop.f32.mrb[0].mxu0
      %v466 = vadd.f32 0.0, %v465
      %467 = vmatprep.mubr.bf16.mxu0 %v395
      %468 = vmatmul.mubr.bf16.gmra.mrb[0].mxu0 %v274
      %v469 = vpop.f32.mrb[0].mxu0
      %v470 = vadd.f32 0.0, %v469
      %v471 = vpop.f32.mrb[0].mxu0
      %v472 = vadd.f32 0.0, %v471
      %v473 = vpop.f32.mrb[0].mxu0
      %v474 = vadd.f32 0.0, %v473
      %v475 = vpop.f32.mrb[0].mxu0
      %v476 = vadd.f32 0.0, %v475
      %477 = vmatprep.mubr.bf16.mxu0 %v398
      %478 = vmatmul.mubr.bf16.gmra.mrb[0].mxu0 %v276
      %v479 = vpop.f32.mrb[0].mxu0
      %v480 = vadd.f32 0.0, %v479
      %v481 = vpop.f32.mrb[0].mxu0
      %v482 = vadd.f32 0.0, %v481
      %v483 = vpop.f32.mrb[0].mxu0
      %v484 = vadd.f32 0.0, %v483
      %v485 = vpop.f32.mrb[0].mxu0
      %v486 = vadd.f32 0.0, %v485
      %487 = vmatprep.mubr.bf16.mxu0 %v401
      %488 = vmatmul.mubr.bf16.gmra.mrb[0].mxu0 %v278
      %v489 = vpop.f32.mrb[0].mxu0
      %v490 = vadd.f32 0.0, %v489
      %v491 = vpop.f32.mrb[0].mxu0
      %v492 = vadd.f32 0.0, %v491
      %v493 = vpop.f32.mrb[0].mxu0
      %v494 = vadd.f32 0.0, %v493
      %v495 = vpop.f32.mrb[0].mxu0
      %v496 = vadd.f32 0.0, %v495
      %497 = vmatprep.mubr.bf16.mxu0 %v404
      %498 = vmatmul.mubr.bf16.gmra.mrb[0].mxu0 %v280
      %v499 = vpop.f32.mrb[0].mxu0
      %v500 = vadd.f32 0.0, %v499
      %v501 = vpop.f32.mrb[0].mxu0
      %v502 = vadd.f32 0.0, %v501
      %v503 = vpop.f32.mrb[0].mxu0
      %v504 = vadd.f32 0.0, %v503
      %v505 = vpop.f32.mrb[0].mxu0
      %v506 = vadd.f32 0.0, %v505
      %507 = vmatprep.mubr.bf16.mxu0 %v407
      %508 = vmatmul.mubr.bf16.gmra.mrb[0].mxu0 %v282
      %v509 = vpop.f32.mrb[0].mxu0
      %v510 = vadd.f32 0.0, %v509
      %v511 = vpop.f32.mrb[0].mxu0
      %v512 = vadd.f32 0.0, %v511
      %v513 = vpop.f32.mrb[0].mxu0
      %v514 = vadd.f32 0.0, %v513
      %v515 = vpop.f32.mrb[0].mxu0
      %v516 = vadd.f32 0.0, %v515
      %517 = vmatprep.mubr.bf16.mxu0 %v410
      %518 = vmatmul.mubr.bf16.gmra.mrb[0].mxu0 %v284
      %v519 = vpop.f32.mrb[0].mxu0
      %v520 = vadd.f32 0.0, %v519
      %v521 = vpop.f32.mrb[0].mxu0
      %v522 = vadd.f32 0.0, %v521
      %v523 = vpop.f32.mrb[0].mxu0
      %v524 = vadd.f32 0.0, %v523
      %v525 = vpop.f32.mrb[0].mxu0
      %v526 = vadd.f32 0.0, %v525
      %527 = vmatprep.mubr.bf16.mxu0 %v413
      %528 = vmatmul.mubr.bf16.gmra.mrb[0].mxu0 %v286
      %v529 = vpop.f32.mrb[0].mxu0
      %v530 = vadd.f32 0.0, %v529
      %v531 = vpop.f32.mrb[0].mxu0
      %v532 = vadd.f32 0.0, %v531
      %v533 = vpop.f32.mrb[0].mxu0
      %v534 = vadd.f32 0.0, %v533
      %v535 = vpop.f32.mrb[0].mxu0
      %v536 = vadd.f32 0.0, %v535
      %537 = vdwg.mxu0
      %538 = vst [vmem:[#allocation2] sm:$0xff] %v450
      %539 = vst [vmem:[#allocation2 + $0x8] sm:$0xff] %v452
      %540 = vst [vmem:[#allocation2 + $0x10] sm:$0xff] %v454
      %541 = vst [vmem:[#allocation2 + $0x18] sm:$0xff] %v456
      %542 = vst [vmem:[#allocation2 + $0x20] sm:$0xff] %v460
      %543 = vst [vmem:[#allocation2 + $0x28] sm:$0xff] %v462
      %544 = vst [vmem:[#allocation2 + $0x30] sm:$0xff] %v464
      %545 = vst [vmem:[#allocation2 + $0x38] sm:$0xff] %v466
      %546 = vst [vmem:[#allocation2 + $0x40] sm:$0xff] %v470
      %547 = vst [vmem:[#allocation2 + $0x48] sm:$0xff] %v472
      %548 = vst [vmem:[#allocation2 + $0x50] sm:$0xff] %v474
      %549 = vst [vmem:[#allocation2 + $0x58] sm:$0xff] %v476
      %550 = vst [vmem:[#allocation2 + $0x60] sm:$0xff] %v480
      %551 = vst [vmem:[#allocation2 + $0x68] sm:$0xff] %v482
      %552 = vst [vmem:[#allocation2 + $0x70] sm:$0xff] %v484
      %553 = vst [vmem:[#allocation2 + $0x78] sm:$0xff] %v486
      %554 = vst [vmem:[#allocation2 + $0x80] sm:$0xff] %v490
      %555 = vst [vmem:[#allocation2 + $0x88] sm:$0xff] %v492
      %556 = vst [vmem:[#allocation2 + $0x90] sm:$0xff] %v494
      %557 = vst [vmem:[#allocation2 + $0x98] sm:$0xff] %v496
      %558 = vst [vmem:[#allocation2 + $0xa0] sm:$0xff] %v500
      %559 = vst [vmem:[#allocation2 + $0xa8] sm:$0xff] %v502
      %560 = vst [vmem:[#allocation2 + $0xb0] sm:$0xff] %v504
      %561 = vst [vmem:[#allocation2 + $0xb8] sm:$0xff] %v506
      %562 = vst [vmem:[#allocation2 + $0xc0] sm:$0xff] %v510
      %563 = vst [vmem:[#allocation2 + $0xc8] sm:$0xff] %v512
      %564 = vst [vmem:[#allocation2 + $0xd0] sm:$0xff] %v514
      %565 = vst [vmem:[#allocation2 + $0xd8] sm:$0xff] %v516
      %566 = vst [vmem:[#allocation2 + $0xe0] sm:$0xff] %v520
      %567 = vst [vmem:[#allocation2 + $0xe8] sm:$0xff] %v522
      %568 = vst [vmem:[#allocation2 + $0xf0] sm:$0xff] %v524
      %569 = vst [vmem:[#allocation2 + $0xf8] sm:$0xff] %v526
      %570 = vst [vmem:[#allocation2 + $0x100] sm:$0xff] %v530
      %571 = vst [vmem:[#allocation2 + $0x108] sm:$0xff] %v532
      %572 = vst [vmem:[#allocation2 + $0x110] sm:$0xff] %v534
      %573 = vst [vmem:[#allocation2 + $0x118] sm:$0xff] %v536
      %v574 = vlaneseq
      %vm575 = vcmp.ge.s32.totalorder %v574, 0
      %vm576 = vcmp.lt.s32.totalorder %v574, 256
      %vm577 = vmand %vm575, %vm576
      %s578 = scalar_lea.vmem [#allocation2], 288
      %579 = vst.msk [vmem:[%s578] ss:$8 sm:$0x3] %vm577, 1.0
      %580 = vst.msk [vmem:[%s578] ss:$8 sm:$0x0] %vm577, 1.0
      %v581 = vld [vmem:[%s2] sm:$0xff]
      %v582 = vld [vmem:[%s2 + $0x8] sm:$0xff]
      %v583 = vld [vmem:[%s2 + $0x10] sm:$0xff]
      %v584 = vld [vmem:[%s2 + $0x18] sm:$0xff]
      %v585 = vld [vmem:[%s2 + $0x20] sm:$0xff]
      %v586 = vld [vmem:[%s2 + $0x28] sm:$0xff]
      %v587 = vld [vmem:[%s2 + $0x30] sm:$0xff]
      %v588 = vld [vmem:[%s2 + $0x38] sm:$0xff]
      %v589 = vld [vmem:[%s2 + $0x40] sm:$0xff]
      %v590 = vld [vmem:[%s2 + $0x48] sm:$0xff]
      %v591 = vld [vmem:[%s2 + $0x50] sm:$0xff]
      %v592 = vld [vmem:[%s2 + $0x58] sm:$0xff]
      %v593 = vld [vmem:[%s2 + $0x60] sm:$0xff]
      %v594 = vld [vmem:[%s2 + $0x68] sm:$0xff]
      %v595 = vld [vmem:[%s2 + $0x70] sm:$0xff]
      %v596 = vld [vmem:[%s2 + $0x78] sm:$0xff]
      %v597 = vld [vmem:[%s2 + $0x80] sm:$0xff]
      %v598 = vld [vmem:[%s2 + $0x88] sm:$0xff]
      %v599 = vld [vmem:[%s2 + $0x90] sm:$0xff]
      %v600 = vld [vmem:[%s2 + $0x98] sm:$0xff]
      %v601 = vld [vmem:[%s2 + $0xa0] sm:$0xff]
      %v602 = vld [vmem:[%s2 + $0xa8] sm:$0xff]
      %v603 = vld [vmem:[%s2 + $0xb0] sm:$0xff]
      %v604 = vld [vmem:[%s2 + $0xb8] sm:$0xff]
      %v605 = vld [vmem:[%s2 + $0xc0] sm:$0xff]
      %v606 = vld [vmem:[%s2 + $0xc8] sm:$0xff]
      %v607 = vld [vmem:[%s2 + $0xd0] sm:$0xff]
      %v608 = vld [vmem:[%s2 + $0xd8] sm:$0xff]
      %v609 = vld [vmem:[%s2 + $0xe0] sm:$0xff]
      %v610 = vld [vmem:[%s2 + $0xe8] sm:$0xff]
      %v611 = vld [vmem:[%s2 + $0xf0] sm:$0xff]
      %v612 = vld [vmem:[%s2 + $0xf8] sm:$0xff]
      %v613 = vld [vmem:[%s2 + $0x100] sm:$0xff]
      %v614 = vld [vmem:[%s2 + $0x108] sm:$0xff]
      %v615 = vld [vmem:[%s2 + $0x110] sm:$0xff]
      %v616 = vld [vmem:[%s2 + $0x118] sm:$0xff]
      %v617 = vld [vmem:[%s2 + $0x120] sm:$0xff]
      %v618 = vld [vmem:[%s2 + $0x128] sm:$0xff]
      %v619 = vld [vmem:[%s2 + $0x130] sm:$0xff]
      %v620 = vld [vmem:[%s2 + $0x138] sm:$0xff]
      %v621 = vld [vmem:[%s2 + $0x140] sm:$0xff]
      %v622 = vld [vmem:[%s2 + $0x148] sm:$0xff]
      %v623 = vld [vmem:[%s2 + $0x150] sm:$0xff]
      %v624 = vld [vmem:[%s2 + $0x158] sm:$0xff]
      %v625 = vld [vmem:[%s2 + $0x160] sm:$0xff]
      %v626 = vld [vmem:[%s2 + $0x168] sm:$0xff]
      %v627 = vld [vmem:[%s2 + $0x170] sm:$0xff]
      %v628 = vld [vmem:[%s2 + $0x178] sm:$0xff]
      %v629 = vld [vmem:[#allocation2] sm:$0xff]
      %v630 = vld [vmem:[#allocation2 + $0x8] sm:$0xff]
      %v631 = vld [vmem:[#allocation2 + $0x10] sm:$0xff]
      %v632 = vld [vmem:[#allocation2 + $0x18] sm:$0xff]
      %v633 = vld [vmem:[#allocation2 + $0x20] sm:$0xff]
      %v634 = vld [vmem:[#allocation2 + $0x28] sm:$0xff]
      %v635 = vld [vmem:[#allocation2 + $0x30] sm:$0xff]
      %v636 = vld [vmem:[#allocation2 + $0x38] sm:$0xff]
      %v637 = vld [vmem:[#allocation2 + $0x40] sm:$0xff]
      %v638 = vld [vmem:[#allocation2 + $0x48] sm:$0xff]
      %v639 = vld [vmem:[#allocation2 + $0x50] sm:$0xff]
      %v640 = vld [vmem:[#allocation2 + $0x58] sm:$0xff]
      %v641 = vld [vmem:[#allocation2 + $0x60] sm:$0xff]
      %v642 = vld [vmem:[#allocation2 + $0x68] sm:$0xff]
      %v643 = vld [vmem:[#allocation2 + $0x70] sm:$0xff]
      %v644 = vld [vmem:[#allocation2 + $0x78] sm:$0xff]
      %v645 = vld [vmem:[#allocation2 + $0x80] sm:$0xff]
      %v646 = vld [vmem:[#allocation2 + $0x88] sm:$0xff]
      %v647 = vld [vmem:[#allocation2 + $0x90] sm:$0xff]
      %v648 = vld [vmem:[#allocation2 + $0x98] sm:$0xff]
      %v649 = vld [vmem:[#allocation2 + $0xa0] sm:$0xff]
      %v650 = vld [vmem:[#allocation2 + $0xa8] sm:$0xff]
      %v651 = vld [vmem:[#allocation2 + $0xb0] sm:$0xff]
      %v652 = vld [vmem:[#allocation2 + $0xb8] sm:$0xff]
      %v653 = vld [vmem:[#allocation2 + $0xc0] sm:$0xff]
      %v654 = vld [vmem:[#allocation2 + $0xc8] sm:$0xff]
      %v655 = vld [vmem:[#allocation2 + $0xd0] sm:$0xff]
      %v656 = vld [vmem:[#allocation2 + $0xd8] sm:$0xff]
      %v657 = vld [vmem:[#allocation2 + $0xe0] sm:$0xff]
      %v658 = vld [vmem:[#allocation2 + $0xe8] sm:$0xff]
      %v659 = vld [vmem:[#allocation2 + $0xf0] sm:$0xff]
      %v660 = vld [vmem:[#allocation2 + $0xf8] sm:$0xff]
      %v661 = vld [vmem:[#allocation2 + $0x100] sm:$0xff]
      %v662 = vld [vmem:[#allocation2 + $0x108] sm:$0xff]
      %v663 = vld [vmem:[#allocation2 + $0x110] sm:$0xff]
      %v664 = vld [vmem:[#allocation2 + $0x118] sm:$0xff]
      %v665 = vld [vmem:[#allocation2 + $0x120] sm:$0x1]
      %v666 = vld [vmem:[#allocation2 + $0x128] sm:$0x1]
      %vm667 = vcmask 138240
      %v669 = vsel %vm667, %v582, 0
      %v672 = vsel %vm667, %v584, 0
      %v675 = vsel %vm667, %v586, 0
      %v678 = vsel %vm667, %v588, 0
      %v681 = vsel %vm667, %v590, 0
      %v684 = vsel %vm667, %v592, 0
      %v687 = vsel %vm667, %v594, 0
      %v690 = vsel %vm667, %v596, 0
      %v693 = vsel %vm667, %v598, 0
      %v696 = vsel %vm667, %v600, 0
      %v699 = vsel %vm667, %v602, 0
      %v702 = vsel %vm667, %v604, 0
      %v705 = vsel %vm667, %v606, 0
      %v708 = vsel %vm667, %v608, 0
      %v711 = vsel %vm667, %v610, 0
      %v714 = vsel %vm667, %v612, 0
      %v717 = vsel %vm667, %v614, 0
      %v720 = vsel %vm667, %v616, 0
      %v723 = vsel %vm667, %v618, 0
      %v726 = vsel %vm667, %v620, 0
      %v729 = vsel %vm667, %v622, 0
      %v732 = vsel %vm667, %v624, 0
      %v735 = vsel %vm667, %v626, 0
      %v738 = vsel %vm667, %v628, 0
      %vm740 = vcmask 1040384
      %v742 = vsel %vm740, %v665, 0
      %v745 = vsel %vm740, %v666, 0
      %747 = vmatprep.subr.mxu0 %v630
      %748 = vmatpush1.msra.mxu0 %v629
      %749 = vmatprep.subr.mxu0 %v632
      %750 = vmatpush1.msra.mxu0 %v631
      %751 = vmatprep.subr.mxu0 %v634
      %752 = vmatpush1.msra.mxu0 %v633
      %753 = vmatprep.subr.mxu0 %v636
      %754 = vmatpush1.msra.mxu0 %v635
      %755 = vmatprep.subr.mxu0 %v638
      %756 = vmatpush1.msra.mxu0 %v637
      %757 = vmatprep.subr.mxu0 %v640
      %758 = vmatpush1.msra.mxu0 %v639
      %759 = vmatprep.subr.mxu0 %v642
      %760 = vmatpush1.msra.mxu0 %v641
      %761 = vmatprep.subr.mxu0 %v644
      %762 = vmatpush1.msra.mxu0 %v643
      %763 = vmatprep.subr.mxu0 %v646
      %764 = vmatpush1.msra.mxu0 %v645
      %765 = vmatprep.subr.mxu0 %v648
      %766 = vmatpush1.msra.mxu0 %v647
      %767 = vmatprep.subr.mxu0 %v650
      %768 = vmatpush1.msra.mxu0 %v649
      %769 = vmatprep.subr.mxu0 %v652
      %770 = vmatpush1.msra.mxu0 %v651
      %771 = vmatprep.subr.mxu0 %v654
      %772 = vmatpush1.msra.mxu0 %v653
      %773 = vmatprep.subr.mxu0 %v656
      %774 = vmatpush1.msra.mxu0 %v655
      %775 = vmatprep.subr.mxu0 %v658
      %776 = vmatpush1.msra.mxu0 %v657
      %777 = vmatprep.subr.mxu0 %v660
      %778 = vmatpush1.msra.mxu0 %v659
      %779 = vmatprep.subr.mxu0 %v662
      %780 = vmatpush1.msra.mxu0 %v661
      %781 = vmatprep.subr.mxu0 %v664
      %782 = vmatpush1.msra.mxu0 %v663
      %783 = vmatprep.subr.mxu0 %v745
      %784 = vmatpush1.msra.mxu0 %v742
      %785 = vmatprep.subr.mxu0 0.0
      %786 = vmatpush1.msra.mxu0 0.0
      %787 = vmatprep.subr.mxu0 0.0
      %788 = vmatpush1.msra.mxu0 0.0
      %789 = vmatprep.subr.mxu0 0.0
      %790 = vmatpush1.msra.mxu0 0.0
      %791 = vmatprep.subr.mxu0 0.0
      %792 = vmatpush1.msra.mxu0 0.0
      %793 = vmatprep.subr.mxu0 0.0
      %794 = vmatpush1.msra.mxu0 0.0
      %795 = vmatprep.subr.mxu0 0.0
      %796 = vmatpush1.msra.mxu0 0.0
      %797 = vmatprep.subr.mxu0 0.0
      %798 = vmatpush1.msra.mxu0 0.0
      %799 = vmatprep.subr.mxu0 0.0
      %800 = vmatpush1.msra.mxu0 0.0
      %801 = vmatprep.subr.mxu0 0.0
      %802 = vmatpush1.msra.mxu0 0.0
      %803 = vmatprep.subr.mxu0 0.0
      %804 = vmatpush1.msra.mxu0 0.0
      %805 = vmatprep.subr.mxu0 0.0
      %806 = vmatpush1.msra.mxu0 0.0
      %807 = vmatprep.subr.mxu0 0.0
      %808 = vmatpush1.msra.mxu0 0.0
      %809 = vmatprep.subr.mxu0 0.0
      %810 = vmatpush1.msra.mxu0 0.0
      %811 = vmatprep.mubr.f32.mxu0 %v669
      %812 = vmatmul.mubr.f32.gmra.mrb[0].mxu0 %v581
      %v813 = vpop.f32.mrb[0].mxu0
      %v814 = vadd.f32 0.0, %v813
      %v815 = vpop.f32.mrb[0].mxu0
      %v816 = vadd.f32 0.0, %v815
      %817 = vmatprep.mubr.f32.mxu0 %v672
      %818 = vmatmul.mubr.f32.gmra.mrb[0].mxu0 %v583
      %v819 = vpop.f32.mrb[0].mxu0
      %v820 = vadd.f32 0.0, %v819
      %v821 = vpop.f32.mrb[0].mxu0
      %v822 = vadd.f32 0.0, %v821
      %823 = vmatprep.mubr.f32.mxu0 %v675
      %824 = vmatmul.mubr.f32.gmra.mrb[0].mxu0 %v585
      %v825 = vpop.f32.mrb[0].mxu0
      %v826 = vadd.f32 0.0, %v825
      %v827 = vpop.f32.mrb[0].mxu0
      %v828 = vadd.f32 0.0, %v827
      %829 = vmatprep.mubr.f32.mxu0 %v678
      %830 = vmatmul.mubr.f32.gmra.mrb[0].mxu0 %v587
      %v831 = vpop.f32.mrb[0].mxu0
      %v832 = vadd.f32 0.0, %v831
      %v833 = vpop.f32.mrb[0].mxu0
      %v834 = vadd.f32 0.0, %v833
      %835 = vmatprep.mubr.f32.mxu0 %v681
      %836 = vmatmul.mubr.f32.gmra.mrb[0].mxu0 %v589
      %v837 = vpop.f32.mrb[0].mxu0
      %v838 = vadd.f32 0.0, %v837
      %v839 = vpop.f32.mrb[0].mxu0
      %v840 = vadd.f32 0.0, %v839
      %841 = vmatprep.mubr.f32.mxu0 %v684
      %842 = vmatmul.mubr.f32.gmra.mrb[0].mxu0 %v591
      %v843 = vpop.f32.mrb[0].mxu0
      %v844 = vadd.f32 0.0, %v843
      %v845 = vpop.f32.mrb[0].mxu0
      %v846 = vadd.f32 0.0, %v845
      %847 = vmatprep.mubr.f32.mxu0 %v687
      %848 = vmatmul.mubr.f32.gmra.mrb[0].mxu0 %v593
      %v849 = vpop.f32.mrb[0].mxu0
      %v850 = vadd.f32 0.0, %v849
      %v851 = vpop.f32.mrb[0].mxu0
      %v852 = vadd.f32 0.0, %v851
      %853 = vmatprep.mubr.f32.mxu0 %v690
      %854 = vmatmul.mubr.f32.gmra.mrb[0].mxu0 %v595
      %v855 = vpop.f32.mrb[0].mxu0
      %v856 = vadd.f32 0.0, %v855
      %v857 = vpop.f32.mrb[0].mxu0
      %v858 = vadd.f32 0.0, %v857
      %859 = vmatprep.mubr.f32.mxu0 %v693
      %860 = vmatmul.mubr.f32.gmra.mrb[0].mxu0 %v597
      %v861 = vpop.f32.mrb[0].mxu0
      %v862 = vadd.f32 0.0, %v861
      %v863 = vpop.f32.mrb[0].mxu0
      %v864 = vadd.f32 0.0, %v863
      %865 = vmatprep.mubr.f32.mxu0 %v696
      %866 = vmatmul.mubr.f32.gmra.mrb[0].mxu0 %v599
      %v867 = vpop.f32.mrb[0].mxu0
      %v868 = vadd.f32 0.0, %v867
      %v869 = vpop.f32.mrb[0].mxu0
      %v870 = vadd.f32 0.0, %v869
      %871 = vmatprep.mubr.f32.mxu0 %v699
      %872 = vmatmul.mubr.f32.gmra.mrb[0].mxu0 %v601
      %v873 = vpop.f32.mrb[0].mxu0
      %v874 = vadd.f32 0.0, %v873
      %v875 = vpop.f32.mrb[0].mxu0
      %v876 = vadd.f32 0.0, %v875
      %877 = vmatprep.mubr.f32.mxu0 %v702
      %878 = vmatmul.mubr.f32.gmra.mrb[0].mxu0 %v603
      %v879 = vpop.f32.mrb[0].mxu0
      %v880 = vadd.f32 0.0, %v879
      %v881 = vpop.f32.mrb[0].mxu0
      %v882 = vadd.f32 0.0, %v881
      %883 = vmatprep.mubr.f32.mxu0 %v705
      %884 = vmatmul.mubr.f32.gmra.mrb[0].mxu0 %v605
      %v885 = vpop.f32.mrb[0].mxu0
      %v886 = vadd.f32 0.0, %v885
      %v887 = vpop.f32.mrb[0].mxu0
      %v888 = vadd.f32 0.0, %v887
      %889 = vmatprep.mubr.f32.mxu0 %v708
      %890 = vmatmul.mubr.f32.gmra.mrb[0].mxu0 %v607
      %v891 = vpop.f32.mrb[0].mxu0
      %v892 = vadd.f32 0.0, %v891
      %v893 = vpop.f32.mrb[0].mxu0
      %v894 = vadd.f32 0.0, %v893
      %895 = vmatprep.mubr.f32.mxu0 %v711
      %896 = vmatmul.mubr.f32.gmra.mrb[0].mxu0 %v609
      %v897 = vpop.f32.mrb[0].mxu0
      %v898 = vadd.f32 0.0, %v897
      %v899 = vpop.f32.mrb[0].mxu0
      %v900 = vadd.f32 0.0, %v899
      %901 = vmatprep.mubr.f32.mxu0 %v714
      %902 = vmatmul.mubr.f32.gmra.mrb[0].mxu0 %v611
      %v903 = vpop.f32.mrb[0].mxu0
      %v904 = vadd.f32 0.0, %v903
      %v905 = vpop.f32.mrb[0].mxu0
      %v906 = vadd.f32 0.0, %v905
      %907 = vmatprep.mubr.f32.mxu0 %v717
      %908 = vmatmul.mubr.f32.gmra.mrb[0].mxu0 %v613
      %v909 = vpop.f32.mrb[0].mxu0
      %v910 = vadd.f32 0.0, %v909
      %v911 = vpop.f32.mrb[0].mxu0
      %v912 = vadd.f32 0.0, %v911
      %913 = vmatprep.mubr.f32.mxu0 %v720
      %914 = vmatmul.mubr.f32.gmra.mrb[0].mxu0 %v615
      %v915 = vpop.f32.mrb[0].mxu0
      %v916 = vadd.f32 0.0, %v915
      %v917 = vpop.f32.mrb[0].mxu0
      %v918 = vadd.f32 0.0, %v917
      %919 = vmatprep.mubr.f32.mxu0 %v723
      %920 = vmatmul.mubr.f32.gmra.mrb[0].mxu0 %v617
      %v921 = vpop.f32.mrb[0].mxu0
      %v922 = vadd.f32 0.0, %v921
      %v923 = vpop.f32.mrb[0].mxu0
      %v924 = vadd.f32 0.0, %v923
      %925 = vmatprep.mubr.f32.mxu0 %v726
      %926 = vmatmul.mubr.f32.gmra.mrb[0].mxu0 %v619
      %v927 = vpop.f32.mrb[0].mxu0
      %v928 = vadd.f32 0.0, %v927
      %v929 = vpop.f32.mrb[0].mxu0
      %v930 = vadd.f32 0.0, %v929
      %931 = vmatprep.mubr.f32.mxu0 %v729
      %932 = vmatmul.mubr.f32.gmra.mrb[0].mxu0 %v621
      %v933 = vpop.f32.mrb[0].mxu0
      %v934 = vadd.f32 0.0, %v933
      %v935 = vpop.f32.mrb[0].mxu0
      %v936 = vadd.f32 0.0, %v935
      %937 = vmatprep.mubr.f32.mxu0 %v732
      %938 = vmatmul.mubr.f32.gmra.mrb[0].mxu0 %v623
      %v939 = vpop.f32.mrb[0].mxu0
      %v940 = vadd.f32 0.0, %v939
      %v941 = vpop.f32.mrb[0].mxu0
      %v942 = vadd.f32 0.0, %v941
      %943 = vmatprep.mubr.f32.mxu0 %v735
      %944 = vmatmul.mubr.f32.gmra.mrb[0].mxu0 %v625
      %v945 = vpop.f32.mrb[0].mxu0
      %v946 = vadd.f32 0.0, %v945
      %v947 = vpop.f32.mrb[0].mxu0
      %v948 = vadd.f32 0.0, %v947
      %949 = vmatprep.mubr.f32.mxu0 %v738
      %950 = vmatmul.mubr.f32.gmra.mrb[0].mxu0 %v627
      %v951 = vpop.f32.mrb[0].mxu0
      %v952 = vadd.f32 0.0, %v951
      %v953 = vpop.f32.mrb[0].mxu0
      %v954 = vadd.f32 0.0, %v953
      %955 = vdwg.mxu0
      %956 = vst [vmem:[%s177] sm:$0xff] %v814
      %957 = vst [vmem:[%s177 + $0x8] sm:$0xff] %v816
      %958 = vst [vmem:[%s177 + $0x10] sm:$0xff] %v820
      %959 = vst [vmem:[%s177 + $0x18] sm:$0xff] %v822
      %960 = vst [vmem:[%s177 + $0x20] sm:$0xff] %v826
      %961 = vst [vmem:[%s177 + $0x28] sm:$0xff] %v828
      %962 = vst [vmem:[%s177 + $0x30] sm:$0xff] %v832
      %963 = vst [vmem:[%s177 + $0x38] sm:$0xff] %v834
      %964 = vst [vmem:[%s177 + $0x40] sm:$0xff] %v838
      %965 = vst [vmem:[%s177 + $0x48] sm:$0xff] %v840
      %966 = vst [vmem:[%s177 + $0x50] sm:$0xff] %v844
      %967 = vst [vmem:[%s177 + $0x58] sm:$0xff] %v846
      %968 = vst [vmem:[%s177 + $0x60] sm:$0xff] %v850
      %969 = vst [vmem:[%s177 + $0x68] sm:$0xff] %v852
      %970 = vst [vmem:[%s177 + $0x70] sm:$0xff] %v856
      %971 = vst [vmem:[%s177 + $0x78] sm:$0xff] %v858
      %972 = vst [vmem:[%s177 + $0x80] sm:$0xff] %v862
      %973 = vst [vmem:[%s177 + $0x88] sm:$0xff] %v864
      %974 = vst [vmem:[%s177 + $0x90] sm:$0xff] %v868
      %975 = vst [vmem:[%s177 + $0x98] sm:$0xff] %v870
      %976 = vst [vmem:[%s177 + $0xa0] sm:$0xff] %v874
      %977 = vst [vmem:[%s177 + $0xa8] sm:$0xff] %v876
      %978 = vst [vmem:[%s177 + $0xb0] sm:$0xff] %v880
      %979 = vst [vmem:[%s177 + $0xb8] sm:$0xff] %v882
      %980 = vst [vmem:[%s177 + $0xc0] sm:$0xff] %v886
      %981 = vst [vmem:[%s177 + $0xc8] sm:$0xff] %v888
      %982 = vst [vmem:[%s177 + $0xd0] sm:$0xff] %v892
      %983 = vst [vmem:[%s177 + $0xd8] sm:$0xff] %v894
      %984 = vst [vmem:[%s177 + $0xe0] sm:$0xff] %v898
      %985 = vst [vmem:[%s177 + $0xe8] sm:$0xff] %v900
      %986 = vst [vmem:[%s177 + $0xf0] sm:$0xff] %v904
      %987 = vst [vmem:[%s177 + $0xf8] sm:$0xff] %v906
      %988 = vst [vmem:[%s177 + $0x100] sm:$0xff] %v910
      %989 = vst [vmem:[%s177 + $0x108] sm:$0xff] %v912
      %990 = vst [vmem:[%s177 + $0x110] sm:$0xff] %v916
      %991 = vst [vmem:[%s177 + $0x118] sm:$0xff] %v918
      %992 = vst [vmem:[%s177 + $0x120] sm:$0xff] %v922
      %993 = vst [vmem:[%s177 + $0x128] sm:$0xff] %v924
      %994 = vst [vmem:[%s177 + $0x130] sm:$0xff] %v928
      %995 = vst [vmem:[%s177 + $0x138] sm:$0xff] %v930
      %996 = vst [vmem:[%s177 + $0x140] sm:$0xff] %v934
      %997 = vst [vmem:[%s177 + $0x148] sm:$0xff] %v936
      %998 = vst [vmem:[%s177 + $0x150] sm:$0xff] %v940
      %999 = vst [vmem:[%s177 + $0x158] sm:$0xff] %v942
      %1000 = vst [vmem:[%s177 + $0x160] sm:$0xff] %v946
      %1001 = vst [vmem:[%s177 + $0x168] sm:$0xff] %v948
      %1002 = vst [vmem:[%s177 + $0x170] sm:$0xff] %v952
      %1003 = vst [vmem:[%s177 + $0x178] sm:$0xff] %v954
      %s1004 = smul.u32 24, %s14
      %p1005 = scmp.lt.s32.totalorder %s1004, 47
      %s1006 = scalar_select %p1005, %s1004, 47
      %s1007 = smul.addr %s1006, 2
      %s1008 = smul.addr %s1007, 8
      %s1009 = scalar_lea.vmem %s3, %s1008
      // Predicated region
      $region33: #{merrgb_transform_batched.1} parent=31 // pred_check
        %p1010 = pneg %p100
      $region34: #{merrgb_transform_batched.1} parent=31 // pred_check_branch
        %1012 = sbr.rel (%p1010) target = $region36
      $region35: #{merrgb_transform_batched.1} parent=31 // pred_region
        %s1013 = smul.u32 24, %s14
      $region36: #{merrgb_transform_batched.1} parent=31 // pred_fallthru
        _
    $region32: #{merrgb_transform_batched.1} parent=5 // pred_fallthru
      _
    %p1014 = scmp.le.s32.totalorder 2, %s9
    // Predicated region
    $region37: #{merrgb_transform_batched.1} parent=5 // pred_check
      %p1015 = pneg %p1014
    $region38: #{merrgb_transform_batched.1} parent=5 // pred_check_branch
      %1017 = sbr.rel (%p1015) target = $region40
    $region39: #{merrgb_transform_batched.1} parent=5 // pred_region
      %s1018 = ssub.s32 %s9, 2
      // Predicated region
      $region41: #{merrgb_transform_batched.1} parent=39 // pred_check
        %p1019 = pneg %p106
      $region42: #{merrgb_transform_batched.1} parent=39 // pred_check_branch
        %1021 = sbr.rel (%p1019) target = $region44
      $region43: #{merrgb_transform_batched.1} parent=39 // pred_region
        %s1022 = smul.u32 24, %s15
        %p1023 = scmp.lt.s32.totalorder %s1022, 47
        %s1024 = scalar_select %p1023, %s1022, 47
        %s1025 = smul.addr %s1024, 2
        %s1026 = smul.addr %s1025, 8
        %s1027 = scalar_lea.vmem %s3, %s1026
      $region44: #{merrgb_transform_batched.1} parent=39 // pred_fallthru
        _
    $region40: #{merrgb_transform_batched.1} parent=5 // pred_fallthru
      _
  $region6: #{merrgb_transform_batched.1} parent=0 // loop_footer
    %s13 = sadd.s32 1, %s9
  $region7: #{merrgb_transform_batched.1} parent=0 // loop_footer_branch
    %8 = sbr.rel target = $region3
  $region8: #{merrgb_transform_batched.1} parent=0 // loop_exit
    _

</llo_original>
